<compile_context>
chip_gen: v7x
topology: tpu7x:2x2x1
jax: 0.10.0
libtpu: 0.0.40
codegen_flags: <defaults>
</compile_context>

<pallas_src>
import jax
import jax.numpy as jnp
from jax.experimental import pallas as pl
from jax.experimental.pallas import tpu as pltpu


# ---------------------------------------------------------------------------
# Fused kernel: one grid step == one batch element
# ---------------------------------------------------------------------------
def fused_kernel(patches_ref, xmeta_ref,
                 w_stem_ref, t_stem_ref,
                 w1_ref, t1_ref,
                 w2_ref, t2_ref,
                 w_fc_ref, b_fc_ref,
                 o_ref):
    # ----- backbone stand-in: conv3x3-as-matmul (BN scale pre-folded into weights)
    h = jnp.dot(patches_ref[...], w_stem_ref[...],
                preferred_element_type=jnp.float32)                   # (HW, F) f32
    h = jnp.maximum(h + t_stem_ref[...], 0.0)                         # BN shift + ReLU

    # ----- global average pool: exact f32 sublane reduction (no pooling matmul)
    inv_hw = 1.0 / float(h.shape[0])
    feat = jnp.sum(h, axis=0, keepdims=True) * inv_hw                 # (1, F)

    # ----- meta branch: Linear -> BN1d -> Swish -> (Dropout=id) -> Linear -> BN1d -> Swish
    xm = xmeta_ref[0].astype(jnp.bfloat16)                            # (1, M)
    hm = jnp.dot(xm, w1_ref[...],
                 preferred_element_type=jnp.float32) + t1_ref[...]    # (1, D1)
    hm = hm * jax.nn.sigmoid(hm)                                      # Swish (f32 VPU+EUP)
    hm = jnp.dot(hm.astype(jnp.bfloat16), w2_ref[...],
                 preferred_element_type=jnp.float32) + t2_ref[...]    # (1, D2)
    hm = hm * jax.nn.sigmoid(hm)

    # ----- head: cat([feat, hm]) @ w_fc + b_fc   (single MXU dot)
    # 5x eval-mode Dropout(0.5) + sum + /5 == one myfc pass, computed directly.
    cat = jnp.concatenate([feat, hm], axis=-1).astype(jnp.bfloat16)   # (1, F+D2)
    logits = jnp.dot(cat, w_fc_ref[...],
                     preferred_element_type=jnp.float32) + b_fc_ref[...]
    o_ref[0] = logits                                                 # lane-dense (1, OUT_PAD)


def resnest_melanoma_fused(patches, xmeta3, p, *, hw, out_pad):
    B = xmeta3.shape[0]
    K = patches.shape[1]
    F = p["w_stem"].shape[1]
    M = xmeta3.shape[2]
    D1 = p["w1"].shape[1]
    D2 = p["w2"].shape[1]
    FD = p["w_fc"].shape[0]

    flops = B * (2 * hw * K * F + hw * F        # stem matmul + shift/ReLU
                 + 2 * M * D1 + 2 * D1 * D2     # meta matmuls
                 + 2 * FD * out_pad)            # head matmul
    transcendentals = B * (D1 + D2)             # sigmoids
    bytes_accessed = (patches.size * patches.dtype.itemsize
                      + xmeta3.size * xmeta3.dtype.itemsize
                      + sum(int(v.size) * v.dtype.itemsize for v in p.values())
                      + B * out_pad * 4)

    grid_spec = pltpu.PrefetchScalarGridSpec(
        num_scalar_prefetch=0,
        grid=(B,),
        in_specs=[
            pl.BlockSpec((hw, K), lambda b: (b, 0)),          # patches (per-batch tile)
            pl.BlockSpec((1, 1, M), lambda b: (b, 0, 0)),     # x_meta row
            pl.BlockSpec((K, F), lambda b: (0, 0)),           # w_stem (BN scale folded)
            pl.BlockSpec((1, F), lambda b: (0, 0)),           # t_stem
            pl.BlockSpec((M, D1), lambda b: (0, 0)),          # w1 (BN scale folded)
            pl.BlockSpec((1, D1), lambda b: (0, 0)),          # t1
            pl.BlockSpec((D1, D2), lambda b: (0, 0)),         # w2 (BN scale folded)
            pl.BlockSpec((1, D2), lambda b: (0, 0)),          # t2
            pl.BlockSpec((FD, out_pad), lambda b: (0, 0)),    # w_fc (concat halves merged)
            pl.BlockSpec((1, out_pad), lambda b: (0, 0)),     # b_fc (lane-padded)
        ],
        out_specs=pl.BlockSpec((1, 1, out_pad), lambda b: (b, 0, 0)),
    )
    return pl.pallas_call(
        fused_kernel,
        out_shape=jax.ShapeDtypeStruct((B, 1, out_pad), jnp.float32),
        grid_spec=grid_spec,
        compiler_params=pltpu.CompilerParams(
            dimension_semantics=("parallel",)),
        cost_estimate=pl.CostEstimate(flops=flops,
                                      transcendentals=transcendentals,
                                      bytes_accessed=bytes_accessed),
    )(patches, xmeta3,
      p["w_stem"], p["t_stem"],
      p["w1"], p["t1"],
      p["w2"], p["t2"],
      p["w_fc"], p["b_fc"])


# ---------------------------------------------------------------------------
# Glue: im2col + BN folding + parameter setup + forward
# ---------------------------------------------------------------------------
def im2col_3x3(x_nchw, k_pad):
    """NCHW -> (B*H*W, k_pad) patches for a stride-1, pad-1 3x3 conv (zero-padded K)."""
    # TODO(synk): build the patch slab in-kernel from the padded NHWC input to kill the
    # HBM round-trip; kept in glue because C=3 lane-width reshapes lower poorly on Mosaic.
    B, C, H, W = x_nchw.shape
    x = jnp.transpose(x_nchw, (0, 2, 3, 1))                           # B,H,W,C
    xp = jnp.pad(x, ((0, 0), (1, 1), (1, 1), (0, 0)))
    taps = [xp[:, di:di + H, dj:dj + W, :] for di in range(3) for dj in range(3)]
    patches = jnp.stack(taps, axis=3).reshape(B * H * W, 9 * C)       # (B*HW, 9C)
    if k_pad > 9 * C:
        patches = jnp.pad(patches, ((0, 0), (0, k_pad - 9 * C)))
    return patches


def fold_bn_into_linear(w, bias, gamma, beta, mean, var, eps=1e-5):
    """Eval-mode BN folded into the preceding conv/linear.

    Returns (w * scale  [bf16],  shift [f32, shape (1, F)]) so the kernel only adds.
    """
    scale = gamma / jnp.sqrt(var + eps)
    w_folded = (w * scale[None, :]).astype(jnp.bfloat16)
    shift = (beta - mean * scale + bias * scale)[None, :].astype(jnp.float32)
    return w_folded, shift


def init_params(key, C, F, M, D1, D2, out_dim, k_pad, out_pad):
    ks = jax.random.split(key, 14)
    p = {}

    # backbone stand-in: conv3x3 (9C, F) zero-padded to (k_pad, F); conv bias + BN folded.
    # NOTE: for the real ResNeSt stem, size K (=9*C_in) to a multiple of 128 (v5e) /
    # 256 (v6e, v7x) so the MXU contraction is full-depth; K_PAD=32 is fine for the toy.
    w_stem = 0.1 * jax.random.normal(ks[0], (9 * C, F), jnp.float32)
    w_stem = jnp.pad(w_stem, ((0, k_pad - 9 * C), (0, 0)))
    b_stem = 0.01 * jax.random.normal(ks[1], (F,), jnp.float32)
    g0 = 1.0 + 0.1 * jax.random.normal(ks[2], (F,), jnp.float32)
    b0 = 0.05 * jax.random.normal(ks[3], (F,), jnp.float32)
    p["w_stem"], p["t_stem"] = fold_bn_into_linear(
        w_stem, b_stem, g0, b0, jnp.zeros((F,)), jnp.ones((F,)))

    # meta branch: Linear+BN folded (x2)
    w1 = 0.1 * jax.random.normal(ks[4], (M, D1), jnp.float32)
    b1 = 0.01 * jax.random.normal(ks[5], (D1,), jnp.float32)
    g1 = 1.0 + 0.1 * jax.random.normal(ks[6], (D1,), jnp.float32)
    bb1 = 0.05 * jax.random.normal(ks[7], (D1,), jnp.float32)
    p["w1"], p["t1"] = fold_bn_into_linear(
        w1, b1, g1, bb1, jnp.zeros((D1,)), jnp.ones((D1,)))

    w2 = 0.1 * jax.random.normal(ks[8], (D1, D2), jnp.float32)
    b2 = 0.01 * jax.random.normal(ks[9], (D2,), jnp.float32)
    g2 = 1.0 + 0.1 * jax.random.normal(ks[10], (D2,), jnp.float32)
    bb2 = 0.05 * jax.random.normal(ks[11], (D2,), jnp.float32)
    p["w2"], p["t2"] = fold_bn_into_linear(
        w2, b2, g2, bb2, jnp.zeros((D2,)), jnp.ones((D2,)))

    # myfc head: one (F+D2, out_pad) weight (cat halves merged), lane-dense padded output.
    w_fc = 0.1 * jax.random.normal(ks[12], (F + D2, out_dim), jnp.float32)
    b_fc = 0.01 * jax.random.normal(ks[13], (out_dim,), jnp.float32)
    p["w_fc"] = jnp.pad(w_fc, ((0, 0), (0, out_pad - out_dim))).astype(jnp.bfloat16)
    p["b_fc"] = jnp.pad(b_fc[None, :], ((0, 0), (0, out_pad - out_dim))).astype(jnp.float32)
    return p


def resnest_melanoma_forward(params, x_nchw, x_meta, out_dim, k_pad, out_pad):
    B, _, H, W = x_nchw.shape
    patches = im2col_3x3(x_nchw, k_pad).astype(jnp.bfloat16)          # glue: reshape/pad only
    xmeta3 = x_meta.reshape(B, 1, -1)                                 # (B, 1, M) for clean blocks
    out = resnest_melanoma_fused(patches, xmeta3, params, hw=H * W, out_pad=out_pad)
    return out.reshape(B, out_pad)[:, :out_dim]                       # un-pad lane-dense slab


if __name__ == "__main__":
    # Small, module-consistent shapes.
    B, C, H, W = 2, 3, 16, 16          # image input (NCHW)
    F = 64                             # stand-in for enet.fc.in_features
    M, D1, D2 = 8, 32, 16              # n_meta_features, n_meta_dim
    OUT_DIM = 4
    K_PAD = 32                         # 9*C = 27 padded (align to 128/256 for the real stem)
    OUT_PAD = 128                      # lane-dense output slab, sliced back to OUT_DIM

    key = jax.random.PRNGKey(0)
    kx, km, kp = jax.random.split(key, 3)
    x = jax.random.normal(kx, (B, C, H, W), jnp.float32)
    x_meta = jax.random.normal(km, (B, M), jnp.float32)
    params = init_params(kp, C, F, M, D1, D2, OUT_DIM, K_PAD, OUT_PAD)

    fwd = jax.jit(lambda p, xi, xm: resnest_melanoma_forward(p, xi, xm, OUT_DIM, K_PAD, OUT_PAD))
    out = fwd(params, x, x_meta)
    jax.block_until_ready(out)
    assert out.shape == (B, OUT_DIM)
    assert bool(jnp.all(jnp.isfinite(out)))
    print("KERNEL_OK")
</pallas_src>

<mosaic_0001>
module attributes {stable_mosaic.version = 11 : i64} {
  func.func @fused_kernel(%arg0: i32, %arg1: memref<256x32xbf16, #tpu.memory_space<vmem>>, %arg2: memref<1x1x8xf32, #tpu.memory_space<vmem>>, %arg3: memref<32x64xbf16, #tpu.memory_space<vmem>>, %arg4: memref<1x64xf32, #tpu.memory_space<vmem>>, %arg5: memref<8x32xbf16, #tpu.memory_space<vmem>>, %arg6: memref<1x32xf32, #tpu.memory_space<vmem>>, %arg7: memref<32x16xbf16, #tpu.memory_space<vmem>>, %arg8: memref<1x16xf32, #tpu.memory_space<vmem>>, %arg9: memref<80x128xbf16, #tpu.memory_space<vmem>>, %arg10: memref<1x128xf32, #tpu.memory_space<vmem>>, %arg11: memref<1x1x128xf32, #tpu.memory_space<vmem>>) attributes {dimension_semantics = [#tpu.dimension_semantics<parallel>], iteration_bounds = array<i64: 2>, scalar_prefetch = 0 : i64, scratch_operands = 0 : i64, tpu.core_type = #tpu.core_type<tc>, window_params = [{transform_indices = @transform_0, window_bounds = array<i64: 256, 32>}, {transform_indices = @transform_1, window_bounds = array<i64: 1, 1, 8>}, {pipeline_mode = #tpu.pipeline_mode<synchronous>, transform_indices = @transform_2, window_bounds = array<i64: 32, 64>}, {pipeline_mode = #tpu.pipeline_mode<synchronous>, transform_indices = @transform_3, window_bounds = array<i64: 1, 64>}, {pipeline_mode = #tpu.pipeline_mode<synchronous>, transform_indices = @transform_4, window_bounds = array<i64: 8, 32>}, {pipeline_mode = #tpu.pipeline_mode<synchronous>, transform_indices = @transform_5, window_bounds = array<i64: 1, 32>}, {pipeline_mode = #tpu.pipeline_mode<synchronous>, transform_indices = @transform_6, window_bounds = array<i64: 32, 16>}, {pipeline_mode = #tpu.pipeline_mode<synchronous>, transform_indices = @transform_7, window_bounds = array<i64: 1, 16>}, {pipeline_mode = #tpu.pipeline_mode<synchronous>, transform_indices = @transform_8, window_bounds = array<i64: 80, 128>}, {pipeline_mode = #tpu.pipeline_mode<synchronous>, transform_indices = @transform_9, window_bounds = array<i64: 1, 128>}, {transform_indices = @transform_10, window_bounds = array<i64: 1, 1, 128>}]} {
    %c0 = arith.constant 0 : index
    %c0_0 = arith.constant 0 : index
    %0 = vector.load %arg1[%c0, %c0_0] : memref<256x32xbf16, #tpu.memory_space<vmem>>, vector<256x32xbf16>
    %c0_1 = arith.constant 0 : index
    %c0_2 = arith.constant 0 : index
    %1 = vector.load %arg3[%c0_1, %c0_2] : memref<32x64xbf16, #tpu.memory_space<vmem>>, vector<32x64xbf16>
    %cst = arith.constant dense<0.000000e+00> : vector<256x64xf32>
    %2 = tpu.matmul %0, %1, %cst {dimension_numbers = #tpu.dot_dimension_numbers<[1], [0], [0], [1], [0, 0, 1, 1], [], []>} : vector<256x32xbf16>, vector<32x64xbf16>, vector<256x64xf32> -> vector<256x64xf32>
    %c0_3 = arith.constant 0 : index
    %c0_4 = arith.constant 0 : index
    %3 = vector.load %arg4[%c0_3, %c0_4] : memref<1x64xf32, #tpu.memory_space<vmem>>, vector<1x64xf32>
    %4 = vector.broadcast %3 : vector<1x64xf32> to vector<256x64xf32>
    %5 = arith.addf %2, %4 : vector<256x64xf32>
    %cst_5 = arith.constant 0.000000e+00 : f32
    %6 = vector.broadcast %cst_5 : f32 to vector<256x64xf32>
    %7 = arith.maximumf %5, %6 : vector<256x64xf32>
    %cst_6 = arith.constant dense<0.000000e+00> : vector<64xf32>
    %8 = vector.multi_reduction <add>, %7, %cst_6 [0] : vector<256x64xf32> to vector<64xf32>
    %9 = vector.shape_cast %8 : vector<64xf32> to vector<1x64xf32>
    %cst_7 = arith.constant 3.906250e-03 : f32
    %10 = vector.broadcast %cst_7 : f32 to vector<1x64xf32>
    %11 = arith.mulf %9, %10 : vector<1x64xf32>
    %c0_8 = arith.constant 0 : index
    %c0_9 = arith.constant 0 : index
    %c0_10 = arith.constant 0 : index
    %12 = vector.load %arg2[%c0_8, %c0_9, %c0_10] : memref<1x1x8xf32, #tpu.memory_space<vmem>>, vector<1x1x8xf32>
    %13 = vector.shape_cast %12 : vector<1x1x8xf32> to vector<1x8xf32>
    %14 = arith.truncf %13 : vector<1x8xf32> to vector<1x8xbf16>
    %c0_11 = arith.constant 0 : index
    %c0_12 = arith.constant 0 : index
    %15 = vector.load %arg5[%c0_11, %c0_12] : memref<8x32xbf16, #tpu.memory_space<vmem>>, vector<8x32xbf16>
    %cst_13 = arith.constant dense<0.000000e+00> : vector<1x32xf32>
    %16 = tpu.matmul %14, %15, %cst_13 {dimension_numbers = #tpu.dot_dimension_numbers<[1], [0], [0], [1], [0, 0, 1, 1], [], []>} : vector<1x8xbf16>, vector<8x32xbf16>, vector<1x32xf32> -> vector<1x32xf32>
    %c0_14 = arith.constant 0 : index
    %c0_15 = arith.constant 0 : index
    %17 = vector.load %arg6[%c0_14, %c0_15] : memref<1x32xf32, #tpu.memory_space<vmem>>, vector<1x32xf32>
    %18 = arith.addf %16, %17 : vector<1x32xf32>
    %19 = arith.negf %18 : vector<1x32xf32>
    %20 = math.exp %19 : vector<1x32xf32>
    %cst_16 = arith.constant 1.000000e+00 : f32
    %21 = vector.broadcast %cst_16 : f32 to vector<1x32xf32>
    %22 = arith.addf %21, %20 : vector<1x32xf32>
    %23 = arith.divf %21, %22 : vector<1x32xf32>
    %24 = arith.mulf %18, %23 : vector<1x32xf32>
    %25 = arith.truncf %24 : vector<1x32xf32> to vector<1x32xbf16>
    %c0_17 = arith.constant 0 : index
    %c0_18 = arith.constant 0 : index
    %26 = vector.load %arg7[%c0_17, %c0_18] : memref<32x16xbf16, #tpu.memory_space<vmem>>, vector<32x16xbf16>
    %cst_19 = arith.constant dense<0.000000e+00> : vector<1x16xf32>
    %27 = tpu.matmul %25, %26, %cst_19 {dimension_numbers = #tpu.dot_dimension_numbers<[1], [0], [0], [1], [0, 0, 1, 1], [], []>} : vector<1x32xbf16>, vector<32x16xbf16>, vector<1x16xf32> -> vector<1x16xf32>
    %c0_20 = arith.constant 0 : index
    %c0_21 = arith.constant 0 : index
    %28 = vector.load %arg8[%c0_20, %c0_21] : memref<1x16xf32, #tpu.memory_space<vmem>>, vector<1x16xf32>
    %29 = arith.addf %27, %28 : vector<1x16xf32>
    %30 = arith.negf %29 : vector<1x16xf32>
    %31 = math.exp %30 : vector<1x16xf32>
    %cst_22 = arith.constant 1.000000e+00 : f32
    %32 = vector.broadcast %cst_22 : f32 to vector<1x16xf32>
    %33 = arith.addf %32, %31 : vector<1x16xf32>
    %34 = arith.divf %32, %33 : vector<1x16xf32>
    %35 = arith.mulf %29, %34 : vector<1x16xf32>
    %36 = tpu.concatenate %11, %35 in 1 : vector<1x64xf32>, vector<1x16xf32> -> vector<1x80xf32>
    %37 = arith.truncf %36 : vector<1x80xf32> to vector<1x80xbf16>
    %c0_23 = arith.constant 0 : index
    %c0_24 = arith.constant 0 : index
    %38 = vector.load %arg9[%c0_23, %c0_24] : memref<80x128xbf16, #tpu.memory_space<vmem>>, vector<80x128xbf16>
    %cst_25 = arith.constant dense<0.000000e+00> : vector<1x128xf32>
    %39 = tpu.matmul %37, %38, %cst_25 {dimension_numbers = #tpu.dot_dimension_numbers<[1], [0], [0], [1], [0, 0, 1, 1], [], []>} : vector<1x80xbf16>, vector<80x128xbf16>, vector<1x128xf32> -> vector<1x128xf32>
    %c0_26 = arith.constant 0 : index
    %c0_27 = arith.constant 0 : index
    %40 = vector.load %arg10[%c0_26, %c0_27] : memref<1x128xf32, #tpu.memory_space<vmem>>, vector<1x128xf32>
    %41 = arith.addf %39, %40 : vector<1x128xf32>
    %c0_28 = arith.constant 0 : index
    %c0_29 = arith.constant 0 : index
    %c0_30 = arith.constant 0 : index
    %42 = vector.load %arg11[%c0_28, %c0_29, %c0_30] : memref<1x1x128xf32, #tpu.memory_space<vmem>>, vector<1x1x128xf32>
    %43 = vector.shape_cast %42 : vector<1x1x128xf32> to vector<1x128xf32>
    %44 = vector.shape_cast %41 : vector<1x128xf32> to vector<1x1x128xf32>
    tpu.vector_store %arg11[%c0_28, %c0_29, %c0_30], %44 {strides = array<i32>} : memref<1x1x128xf32, #tpu.memory_space<vmem>>, vector<1x1x128xf32>,
    return
  }
  func.func @transform_0(%arg0: i32) -> (i32, i32) {
    %c0_i32 = arith.constant 0 : i32
    %c0_i32_0 = arith.constant 0 : i32
    return %arg0, %c0_i32 : i32, i32
  }
  func.func @transform_1(%arg0: i32) -> (i32, i32, i32) {
    %c0_i32 = arith.constant 0 : i32
    %c0_i32_0 = arith.constant 0 : i32
    %c0_i32_1 = arith.constant 0 : i32
    return %arg0, %c0_i32, %c0_i32_0 : i32, i32, i32
  }
  func.func @transform_2(%arg0: i32) -> (i32, i32) {
    %c0_i32 = arith.constant 0 : i32
    %c0_i32_0 = arith.constant 0 : i32
    %c0_i32_1 = arith.constant 0 : i32
    return %c0_i32, %c0_i32_0 : i32, i32
  }
  func.func @transform_3(%arg0: i32) -> (i32, i32) {
    %c0_i32 = arith.constant 0 : i32
    %c0_i32_0 = arith.constant 0 : i32
    %c0_i32_1 = arith.constant 0 : i32
    return %c0_i32, %c0_i32_0 : i32, i32
  }
  func.func @transform_4(%arg0: i32) -> (i32, i32) {
    %c0_i32 = arith.constant 0 : i32
    %c0_i32_0 = arith.constant 0 : i32
    %c0_i32_1 = arith.constant 0 : i32
    return %c0_i32, %c0_i32_0 : i32, i32
  }
  func.func @transform_5(%arg0: i32) -> (i32, i32) {
    %c0_i32 = arith.constant 0 : i32
    %c0_i32_0 = arith.constant 0 : i32
    %c0_i32_1 = arith.constant 0 : i32
    return %c0_i32, %c0_i32_0 : i32, i32
  }
  func.func @transform_6(%arg0: i32) -> (i32, i32) {
    %c0_i32 = arith.constant 0 : i32
    %c0_i32_0 = arith.constant 0 : i32
    %c0_i32_1 = arith.constant 0 : i32
    return %c0_i32, %c0_i32_0 : i32, i32
  }
  func.func @transform_7(%arg0: i32) -> (i32, i32) {
    %c0_i32 = arith.constant 0 : i32
    %c0_i32_0 = arith.constant 0 : i32
    %c0_i32_1 = arith.constant 0 : i32
    return %c0_i32, %c0_i32_0 : i32, i32
  }
  func.func @transform_8(%arg0: i32) -> (i32, i32) {
    %c0_i32 = arith.constant 0 : i32
    %c0_i32_0 = arith.constant 0 : i32
    %c0_i32_1 = arith.constant 0 : i32
    return %c0_i32, %c0_i32_0 : i32, i32
  }
  func.func @transform_9(%arg0: i32) -> (i32, i32) {
    %c0_i32 = arith.constant 0 : i32
    %c0_i32_0 = arith.constant 0 : i32
    %c0_i32_1 = arith.constant 0 : i32
    return %c0_i32, %c0_i32_0 : i32, i32
  }
  func.func @transform_10(%arg0: i32) -> (i32, i32, i32) {
    %c0_i32 = arith.constant 0 : i32
    %c0_i32_0 = arith.constant 0 : i32
    %c0_i32_1 = arith.constant 0 : i32
    return %arg0, %c0_i32, %c0_i32_0 : i32, i32, i32
  }
}

</mosaic_0001>

<llo_original>
// kernel: _lambda_.1
$region0: #{_lambda_.1}
  #allocation0 [shape = 'u32[]', space=smem, size = 0x4, offset = 0x4, fixed_abs, tag = 'smem constant byte address 0x4 - core index']
  #allocation1 [shape = 'u32[144,128]{1,0:T(1,128)}', space=vmem, size = 0x12000, scoped, tag = 'internal scratch']
  %s0 = inlined_call_operand.vmem [shape: bf16[512,32], index: 0, kind: input, shape index: {}]
  %s1 = inlined_call_operand.vmem [shape: f32[2,1,8], index: 1, kind: input, shape index: {}]
  %s2 = inlined_call_operand.vmem [shape: bf16[32,64], index: 2, kind: input, shape index: {}]
  %s3 = inlined_call_operand.vmem [shape: f32[1,64], index: 3, kind: input, shape index: {}]
  %s4 = inlined_call_operand.vmem [shape: bf16[8,32], index: 4, kind: input, shape index: {}]
  %s5 = inlined_call_operand.vmem [shape: f32[1,32], index: 5, kind: input, shape index: {}]
  %s6 = inlined_call_operand.vmem [shape: bf16[32,16], index: 6, kind: input, shape index: {}]
  %s7 = inlined_call_operand.vmem [shape: f32[1,16], index: 7, kind: input, shape index: {}]
  %s8 = inlined_call_operand.vmem [shape: bf16[80,128], index: 8, kind: input, shape index: {}]
  %s9 = inlined_call_operand.vmem [shape: f32[1,128], index: 9, kind: input, shape index: {}]
  %s10 = inlined_call_operand.hbm [shape: f32[2,1,128], index: 10, kind: output, shape index: {}]
  %s11 = sld [smem:[#allocation0]]
  $region73: #{_lambda_.1} parent=0
    _
  %s13 = ssub.s32 1, %s11
  %s14 = scalar_select 0, %s13, %s11
  $region1: #{_lambda_.1} parent=0
    #allocation2 [shape = 'u8[1024]{0}', space=vmem, size = 0x400, scoped, tag = 'output window, operand 0']
    #allocation3 [shape = 's32[2]{0}', space=sflag, size = 0x8, scoped, tag = 'scoped memory for _lambda_.1']
    %15 = vsyncpa [#allocation3], 0
    %s16 = scalar_lea.sflag [#allocation3], 1
    %17 = vsyncpa %s16, 0
    loop: start=0, step=1, limit=4
    $region2: #{_lambda_.1} parent=1 // loop_pre_header
      _
    $region3: #{_lambda_.1} parent=1 // loop_header
      %s19 = sphi 0, %s23
      %p20 = scmp.ge.s32.totalorder %s19, 4
      %s29 = sphi 0, %s31
      %s32 = sphi 0, %s29
      %s33 = sphi 0, %s32
      %s49 = sphi 0, %s33
      %s55 = sphi 0, %s57
      %s58 = sphi 0, %s55
      %s59 = sphi 0, %s58
      %s75 = sphi 0, %s59
      %s79 = sphi 0, %s79
      %s81 = sphi 0, %s79
      %s82 = sphi 0, %s81
      %s96 = sphi 0, %s82
      %s100 = sphi 0, %s100
      %s102 = sphi 0, %s100
      %s103 = sphi 0, %s102
      %s117 = sphi 0, %s103
      %s121 = sphi 0, %s121
      %s123 = sphi 0, %s121
      %s124 = sphi 0, %s123
      %s138 = sphi 0, %s124
      %s142 = sphi 0, %s142
      %s144 = sphi 0, %s142
      %s145 = sphi 0, %s144
      %s159 = sphi 0, %s145
      %s163 = sphi 0, %s163
      %s165 = sphi 0, %s163
      %s166 = sphi 0, %s165
      %s180 = sphi 0, %s166
      %s184 = sphi 0, %s184
      %s186 = sphi 0, %s184
      %s187 = sphi 0, %s186
      %s201 = sphi 0, %s187
      %s205 = sphi 0, %s205
      %s207 = sphi 0, %s205
      %s208 = sphi 0, %s207
      %s222 = sphi 0, %s208
      %s226 = sphi 0, %s226
      %s228 = sphi 0, %s226
      %s229 = sphi 0, %s228
      %s243 = sphi 0, %s229
      %s249 = sphi 0, %s251
      %s252 = sphi 0, %s249
      %s253 = sphi 0, %s252
      %s269 = sphi 0, %s253
    $region4: #{_lambda_.1} parent=1 // loop_header_branch
      %22 = sbr.rel (%p20) target = $region8
    $region5: #{_lambda_.1} parent=1 // loop_body
      %s24 = ssub.s32 %s19, 1
      %s25 = ssub.s32 %s19, 2
      %s26 = sadd.s32 %s19, 1
      %s27 = ssub.s32 %s19, %s26
      %p28 = scmp.eq.s32.totalorder %s27, 0
      %s30 = sadd.s32 %s29, 1
      %s31 = scalar_select %p28, %s29, %s30
      %p34 = pneg %p28
      %p35 = scmp.eq.s32.totalorder %s19, 1
      %p36 = por %p34, %p35
      %p37 = scmp.ne.s32.totalorder %s29, %s32
      %p38 = scmp.eq.s32.totalorder %s19, 0
      %p39 = por %p37, %p38
      %p40 = scmp.ne.s32.totalorder %s29, %s32
      %p41 = scmp.eq.s32.totalorder %s24, 1
      %p42 = por %p40, %p41
      %p43 = scmp.ne.s32.totalorder %s32, %s33
      %p44 = scmp.eq.s32.totalorder %s24, 0
      %p45 = por %p43, %p44
      %p46 = scmp.ne.s32.totalorder %s32, %s33
      %p47 = scmp.eq.s32.totalorder %s25, 1
      %p48 = por %p46, %p47
      %p50 = scmp.ne.s32.totalorder %s33, %s49
      %p51 = scmp.eq.s32.totalorder %s25, 0
      %p52 = por %p50, %p51
      %s53 = ssub.s32 %s19, %s26
      %p54 = scmp.eq.s32.totalorder %s53, 0
      %s56 = sadd.s32 %s55, 1
      %s57 = scalar_select %p54, %s55, %s56
      %p60 = pneg %p54
      %p61 = scmp.eq.s32.totalorder %s19, 1
      %p62 = por %p60, %p61
      %p63 = scmp.ne.s32.totalorder %s55, %s58
      %p64 = scmp.eq.s32.totalorder %s19, 0
      %p65 = por %p63, %p64
      %p66 = scmp.ne.s32.totalorder %s55, %s58
      %p67 = scmp.eq.s32.totalorder %s24, 1
      %p68 = por %p66, %p67
      %p69 = scmp.ne.s32.totalorder %s58, %s59
      %p70 = scmp.eq.s32.totalorder %s24, 0
      %p71 = por %p69, %p70
      %p72 = scmp.ne.s32.totalorder %s58, %s59
      %p73 = scmp.eq.s32.totalorder %s25, 1
      %p74 = por %p72, %p73
      %p76 = scmp.ne.s32.totalorder %s59, %s75
      %p77 = scmp.eq.s32.totalorder %s25, 0
      %p78 = por %p76, %p77
      %s80 = sadd.s32 %s79, 1
      %p83 = scmp.eq.s32.totalorder %s19, 1
      %p84 = scmp.ne.s32.totalorder %s79, %s81
      %p85 = scmp.eq.s32.totalorder %s19, 0
      %p86 = por %p84, %p85
      %p87 = scmp.ne.s32.totalorder %s79, %s81
      %p88 = scmp.eq.s32.totalorder %s24, 1
      %p89 = por %p87, %p88
      %p90 = scmp.ne.s32.totalorder %s81, %s82
      %p91 = scmp.eq.s32.totalorder %s24, 0
      %p92 = por %p90, %p91
      %p93 = scmp.ne.s32.totalorder %s81, %s82
      %p94 = scmp.eq.s32.totalorder %s25, 1
      %p95 = por %p93, %p94
      %p97 = scmp.ne.s32.totalorder %s82, %s96
      %p98 = scmp.eq.s32.totalorder %s25, 0
      %p99 = por %p97, %p98
      %s101 = sadd.s32 %s100, 1
      %p104 = scmp.eq.s32.totalorder %s19, 1
      %p105 = scmp.ne.s32.totalorder %s100, %s102
      %p106 = scmp.eq.s32.totalorder %s19, 0
      %p107 = por %p105, %p106
      %p108 = scmp.ne.s32.totalorder %s100, %s102
      %p109 = scmp.eq.s32.totalorder %s24, 1
      %p110 = por %p108, %p109
      %p111 = scmp.ne.s32.totalorder %s102, %s103
      %p112 = scmp.eq.s32.totalorder %s24, 0
      %p113 = por %p111, %p112
      %p114 = scmp.ne.s32.totalorder %s102, %s103
      %p115 = scmp.eq.s32.totalorder %s25, 1
      %p116 = por %p114, %p115
      %p118 = scmp.ne.s32.totalorder %s103, %s117
      %p119 = scmp.eq.s32.totalorder %s25, 0
      %p120 = por %p118, %p119
      %s122 = sadd.s32 %s121, 1
      %p125 = scmp.eq.s32.totalorder %s19, 1
      %p126 = scmp.ne.s32.totalorder %s121, %s123
      %p127 = scmp.eq.s32.totalorder %s19, 0
      %p128 = por %p126, %p127
      %p129 = scmp.ne.s32.totalorder %s121, %s123
      %p130 = scmp.eq.s32.totalorder %s24, 1
      %p131 = por %p129, %p130
      %p132 = scmp.ne.s32.totalorder %s123, %s124
      %p133 = scmp.eq.s32.totalorder %s24, 0
      %p134 = por %p132, %p133
      %p135 = scmp.ne.s32.totalorder %s123, %s124
      %p136 = scmp.eq.s32.totalorder %s25, 1
      %p137 = por %p135, %p136
      %p139 = scmp.ne.s32.totalorder %s124, %s138
      %p140 = scmp.eq.s32.totalorder %s25, 0
      %p141 = por %p139, %p140
      %s143 = sadd.s32 %s142, 1
      %p146 = scmp.eq.s32.totalorder %s19, 1
      %p147 = scmp.ne.s32.totalorder %s142, %s144
      %p148 = scmp.eq.s32.totalorder %s19, 0
      %p149 = por %p147, %p148
      %p150 = scmp.ne.s32.totalorder %s142, %s144
      %p151 = scmp.eq.s32.totalorder %s24, 1
      %p152 = por %p150, %p151
      %p153 = scmp.ne.s32.totalorder %s144, %s145
      %p154 = scmp.eq.s32.totalorder %s24, 0
      %p155 = por %p153, %p154
      %p156 = scmp.ne.s32.totalorder %s144, %s145
      %p157 = scmp.eq.s32.totalorder %s25, 1
      %p158 = por %p156, %p157
      %p160 = scmp.ne.s32.totalorder %s145, %s159
      %p161 = scmp.eq.s32.totalorder %s25, 0
      %p162 = por %p160, %p161
      %s164 = sadd.s32 %s163, 1
      %p167 = scmp.eq.s32.totalorder %s19, 1
      %p168 = scmp.ne.s32.totalorder %s163, %s165
      %p169 = scmp.eq.s32.totalorder %s19, 0
      %p170 = por %p168, %p169
      %p171 = scmp.ne.s32.totalorder %s163, %s165
      %p172 = scmp.eq.s32.totalorder %s24, 1
      %p173 = por %p171, %p172
      %p174 = scmp.ne.s32.totalorder %s165, %s166
      %p175 = scmp.eq.s32.totalorder %s24, 0
      %p176 = por %p174, %p175
      %p177 = scmp.ne.s32.totalorder %s165, %s166
      %p178 = scmp.eq.s32.totalorder %s25, 1
      %p179 = por %p177, %p178
      %p181 = scmp.ne.s32.totalorder %s166, %s180
      %p182 = scmp.eq.s32.totalorder %s25, 0
      %p183 = por %p181, %p182
      %s185 = sadd.s32 %s184, 1
      %p188 = scmp.eq.s32.totalorder %s19, 1
      %p189 = scmp.ne.s32.totalorder %s184, %s186
      %p190 = scmp.eq.s32.totalorder %s19, 0
      %p191 = por %p189, %p190
      %p192 = scmp.ne.s32.totalorder %s184, %s186
      %p193 = scmp.eq.s32.totalorder %s24, 1
      %p194 = por %p192, %p193
      %p195 = scmp.ne.s32.totalorder %s186, %s187
      %p196 = scmp.eq.s32.totalorder %s24, 0
      %p197 = por %p195, %p196
      %p198 = scmp.ne.s32.totalorder %s186, %s187
      %p199 = scmp.eq.s32.totalorder %s25, 1
      %p200 = por %p198, %p199
      %p202 = scmp.ne.s32.totalorder %s187, %s201
      %p203 = scmp.eq.s32.totalorder %s25, 0
      %p204 = por %p202, %p203
      %s206 = sadd.s32 %s205, 1
      %p209 = scmp.eq.s32.totalorder %s19, 1
      %p210 = scmp.ne.s32.totalorder %s205, %s207
      %p211 = scmp.eq.s32.totalorder %s19, 0
      %p212 = por %p210, %p211
      %p213 = scmp.ne.s32.totalorder %s205, %s207
      %p214 = scmp.eq.s32.totalorder %s24, 1
      %p215 = por %p213, %p214
      %p216 = scmp.ne.s32.totalorder %s207, %s208
      %p217 = scmp.eq.s32.totalorder %s24, 0
      %p218 = por %p216, %p217
      %p219 = scmp.ne.s32.totalorder %s207, %s208
      %p220 = scmp.eq.s32.totalorder %s25, 1
      %p221 = por %p219, %p220
      %p223 = scmp.ne.s32.totalorder %s208, %s222
      %p224 = scmp.eq.s32.totalorder %s25, 0
      %p225 = por %p223, %p224
      %s227 = sadd.s32 %s226, 1
      %p230 = scmp.eq.s32.totalorder %s19, 1
      %p231 = scmp.ne.s32.totalorder %s226, %s228
      %p232 = scmp.eq.s32.totalorder %s19, 0
      %p233 = por %p231, %p232
      %p234 = scmp.ne.s32.totalorder %s226, %s228
      %p235 = scmp.eq.s32.totalorder %s24, 1
      %p236 = por %p234, %p235
      %p237 = scmp.ne.s32.totalorder %s228, %s229
      %p238 = scmp.eq.s32.totalorder %s24, 0
      %p239 = por %p237, %p238
      %p240 = scmp.ne.s32.totalorder %s228, %s229
      %p241 = scmp.eq.s32.totalorder %s25, 1
      %p242 = por %p240, %p241
      %p244 = scmp.ne.s32.totalorder %s229, %s243
      %p245 = scmp.eq.s32.totalorder %s25, 0
      %p246 = por %p244, %p245
      %s247 = ssub.s32 %s19, %s26
      %p248 = scmp.eq.s32.totalorder %s247, 0
      %s250 = sadd.s32 %s249, 1
      %s251 = scalar_select %p248, %s249, %s250
      %p254 = pneg %p248
      %p255 = scmp.eq.s32.totalorder %s19, 1
      %p256 = por %p254, %p255
      %p257 = scmp.ne.s32.totalorder %s249, %s252
      %p258 = scmp.eq.s32.totalorder %s19, 0
      %p259 = por %p257, %p258
      %p260 = scmp.ne.s32.totalorder %s249, %s252
      %p261 = scmp.eq.s32.totalorder %s24, 1
      %p262 = por %p260, %p261
      %p263 = scmp.ne.s32.totalorder %s252, %s253
      %p264 = scmp.eq.s32.totalorder %s24, 0
      %p265 = por %p263, %p264
      %p266 = scmp.ne.s32.totalorder %s252, %s253
      %p267 = scmp.eq.s32.totalorder %s25, 1
      %p268 = por %p266, %p267
      %p270 = scmp.ne.s32.totalorder %s253, %s269
      %p271 = scmp.eq.s32.totalorder %s25, 0
      %p272 = por %p270, %p271
      %p273 = scmp.le.s32.totalorder 1, %s19
      %p274 = scmp.lt.s32.totalorder %s19, 3
      %p275 = pnand %p273, %p274
      %p276 = pneg %p275
      // Predicated region
      $region9: #{_lambda_.1} parent=5 // pred_check
        _
      $region10: #{_lambda_.1} parent=5 // pred_check_branch
        %278 = sbr.rel (%p275) target = $region12
      $region11: #{_lambda_.1} parent=5 // pred_region
        %s279 = ssub.s32 %s19, 1
        // Predicated region
        $region13: #{_lambda_.1} parent=11 // pred_check
          %p280 = pneg %p92
        $region14: #{_lambda_.1} parent=11 // pred_check_branch
          %282 = sbr.rel (%p280) target = $region16
        $region15: #{_lambda_.1} parent=11 // pred_region
          _
        $region16: #{_lambda_.1} parent=11 // pred_fallthru
          _
        // Predicated region
        $region17: #{_lambda_.1} parent=11 // pred_check
          %p283 = pneg %p113
        $region18: #{_lambda_.1} parent=11 // pred_check_branch
          %285 = sbr.rel (%p283) target = $region20
        $region19: #{_lambda_.1} parent=11 // pred_region
          _
        $region20: #{_lambda_.1} parent=11 // pred_fallthru
          _
        // Predicated region
        $region21: #{_lambda_.1} parent=11 // pred_check
          %p286 = pneg %p134
        $region22: #{_lambda_.1} parent=11 // pred_check_branch
          %288 = sbr.rel (%p286) target = $region24
        $region23: #{_lambda_.1} parent=11 // pred_region
          _
        $region24: #{_lambda_.1} parent=11 // pred_fallthru
          _
        // Predicated region
        $region25: #{_lambda_.1} parent=11 // pred_check
          %p289 = pneg %p155
        $region26: #{_lambda_.1} parent=11 // pred_check_branch
          %291 = sbr.rel (%p289) target = $region28
        $region27: #{_lambda_.1} parent=11 // pred_region
          _
        $region28: #{_lambda_.1} parent=11 // pred_fallthru
          _
        // Predicated region
        $region29: #{_lambda_.1} parent=11 // pred_check
          %p292 = pneg %p176
        $region30: #{_lambda_.1} parent=11 // pred_check_branch
          %294 = sbr.rel (%p292) target = $region32
        $region31: #{_lambda_.1} parent=11 // pred_region
          _
        $region32: #{_lambda_.1} parent=11 // pred_fallthru
          _
        // Predicated region
        $region33: #{_lambda_.1} parent=11 // pred_check
          %p295 = pneg %p197
        $region34: #{_lambda_.1} parent=11 // pred_check_branch
          %297 = sbr.rel (%p295) target = $region36
        $region35: #{_lambda_.1} parent=11 // pred_region
          _
        $region36: #{_lambda_.1} parent=11 // pred_fallthru
          _
        // Predicated region
        $region37: #{_lambda_.1} parent=11 // pred_check
          %p298 = pneg %p218
        $region38: #{_lambda_.1} parent=11 // pred_check_branch
          %300 = sbr.rel (%p298) target = $region40
        $region39: #{_lambda_.1} parent=11 // pred_region
          _
        $region40: #{_lambda_.1} parent=11 // pred_fallthru
          _
        // Predicated region
        $region41: #{_lambda_.1} parent=11 // pred_check
          %p301 = pneg %p239
        $region42: #{_lambda_.1} parent=11 // pred_check_branch
          %303 = sbr.rel (%p301) target = $region44
        $region43: #{_lambda_.1} parent=11 // pred_region
          _
        $region44: #{_lambda_.1} parent=11 // pred_fallthru
          _
      $region12: #{_lambda_.1} parent=5 // pred_fallthru
        _
      %p304 = scmp.lt.s32.totalorder %s19, 2
      // Predicated region
      $region45: #{_lambda_.1} parent=5 // pred_check
        %p305 = pneg %p304
      $region46: #{_lambda_.1} parent=5 // pred_check_branch
        %307 = sbr.rel (%p305) target = $region48
      $region47: #{_lambda_.1} parent=5 // pred_region
        // Predicated region
        $region49: #{_lambda_.1} parent=47 // pred_check
          %p308 = pneg %p39
        $region50: #{_lambda_.1} parent=47 // pred_check_branch
          %310 = sbr.rel (%p308) target = $region52
        $region51: #{_lambda_.1} parent=47 // pred_region
          %s311 = smul.u32 32, %s19
          %p312 = scmp.lt.s32.totalorder %s311, 63
          %s313 = scalar_select %p312, %s311, 63
          %s314 = smul.addr %s313, 4
          %s315 = scalar_lea.vmem %s0, %s314
          %s316 = smul.u32 32, %s19
        $region52: #{_lambda_.1} parent=47 // pred_fallthru
          _
        // Predicated region
        $region53: #{_lambda_.1} parent=47 // pred_check
          %p317 = pneg %p65
        $region54: #{_lambda_.1} parent=47 // pred_check_branch
          %319 = sbr.rel (%p317) target = $region56
        $region55: #{_lambda_.1} parent=47 // pred_region
          %p320 = scmp.lt.s32.totalorder %s19, 1
          %s321 = scalar_select %p320, %s19, 1
          %s322 = scalar_lea.vmem %s1, %s321
        $region56: #{_lambda_.1} parent=47 // pred_fallthru
          _
      $region48: #{_lambda_.1} parent=5 // pred_fallthru
        _
      %p323 = scmp.le.s32.totalorder 1, %s19
      %p324 = scmp.lt.s32.totalorder %s19, 3
      %p325 = pnand %p323, %p324
      %p326 = pneg %p325
      // Predicated region
      $region57: #{_lambda_.1} parent=5 // pred_check
        _
      $region58: #{_lambda_.1} parent=5 // pred_check_branch
        %328 = sbr.rel (%p325) target = $region60
      $region59: #{_lambda_.1} parent=5 // pred_region
        %s329 = ssub.s32 %s19, 1
        %s330 = smul.u32 32, %s24
        %p331 = scmp.lt.s32.totalorder %s330, 63
        %s332 = scalar_select %p331, %s330, 63
        %s333 = smul.addr %s332, 4
        %s334 = scalar_lea.vmem %s0, %s333
        %p335 = pneg %p45
        %p336 = pneg %p42
        %p337 = scmp.lt.s32.totalorder %s24, 1
        %s338 = scalar_select %p337, %s24, 1
        %s339 = scalar_lea.vmem %s1, %s338
        %p340 = pneg %p71
        %p341 = pneg %p68
        %p342 = pneg %p92
        %p343 = pneg %p89
        %p344 = pneg %p113
        %p345 = pneg %p110
        %p346 = pneg %p134
        %p347 = pneg %p131
        %p348 = pneg %p155
        %p349 = pneg %p152
        %p350 = pneg %p176
        %p351 = pneg %p173
        %p352 = pneg %p197
        %p353 = pneg %p194
        %p354 = pneg %p218
        %p355 = pneg %p215
        %p356 = pneg %p239
        %p357 = pneg %p236
        %p358 = pneg %p265
        %p359 = pneg %p262
        %s360 = sand.u32 %s252, 1
        %s361 = scalar_lea.sflag [#allocation3], %s360
        %s362 = sand.u32 %s252, 1
        %s363 = scalar_lea.vmem [#allocation2], %s362
        %s364 = smul.u32 32, %s24
        %p365 = scmp.lt.s32.totalorder %s364, 63
        %s366 = scalar_select %p365, %s364, 63
        %s367 = smul.addr %s366, 4
        %s368 = scalar_lea.vmem %s0, %s367
        %s369 = smul.u32 32, %s24
        %p370 = scmp.lt.s32.totalorder %s24, 1
        %s371 = scalar_select %p370, %s24, 1
        %s372 = scalar_lea.vmem %s1, %s371
        %v374 = vld [vmem:[%s368] sm:$0xf]
        %v375 = vld [vmem:[%s368 + $0x4] sm:$0xf]
        %v376 = vld [vmem:[%s368 + $0x8] sm:$0xf]
        %v377 = vld [vmem:[%s368 + $0xc] sm:$0xf]
        %v378 = vld [vmem:[%s368 + $0x10] sm:$0xf]
        %v379 = vld [vmem:[%s368 + $0x14] sm:$0xf]
        %v380 = vld [vmem:[%s368 + $0x18] sm:$0xf]
        %v381 = vld [vmem:[%s368 + $0x1c] sm:$0xf]
        %v382 = vld [vmem:[%s368 + $0x20] sm:$0xf]
        %v383 = vld [vmem:[%s368 + $0x24] sm:$0xf]
        %v384 = vld [vmem:[%s368 + $0x28] sm:$0xf]
        %v385 = vld [vmem:[%s368 + $0x2c] sm:$0xf]
        %v386 = vld [vmem:[%s368 + $0x30] sm:$0xf]
        %v387 = vld [vmem:[%s368 + $0x34] sm:$0xf]
        %v388 = vld [vmem:[%s368 + $0x38] sm:$0xf]
        %v389 = vld [vmem:[%s368 + $0x3c] sm:$0xf]
        %v390 = vld [vmem:[%s368 + $0x40] sm:$0xf]
        %v391 = vld [vmem:[%s368 + $0x44] sm:$0xf]
        %v392 = vld [vmem:[%s368 + $0x48] sm:$0xf]
        %v393 = vld [vmem:[%s368 + $0x4c] sm:$0xf]
        %v394 = vld [vmem:[%s368 + $0x50] sm:$0xf]
        %v395 = vld [vmem:[%s368 + $0x54] sm:$0xf]
        %v396 = vld [vmem:[%s368 + $0x58] sm:$0xf]
        %v397 = vld [vmem:[%s368 + $0x5c] sm:$0xf]
        %v398 = vld [vmem:[%s368 + $0x60] sm:$0xf]
        %v399 = vld [vmem:[%s368 + $0x64] sm:$0xf]
        %v400 = vld [vmem:[%s368 + $0x68] sm:$0xf]
        %v401 = vld [vmem:[%s368 + $0x6c] sm:$0xf]
        %v402 = vld [vmem:[%s368 + $0x70] sm:$0xf]
        %v403 = vld [vmem:[%s368 + $0x74] sm:$0xf]
        %v404 = vld [vmem:[%s368 + $0x78] sm:$0xf]
        %v405 = vld [vmem:[%s368 + $0x7c] sm:$0xf]
        %v406 = vld [vmem:[%s2] sm:$0xf]
        %v407 = vld [vmem:[%s2 + $0x4] sm:$0xf]
        %v408 = vld [vmem:[%s2 + $0x8] sm:$0xf]
        %v409 = vld [vmem:[%s2 + $0xc] sm:$0xf]
        %v410 = vld [vmem:[%s3] sm:$0x1]
        %v412 = vlaneseq
        %v413 = vshrl.u32 %v412, 7
        %v414 = vsub.s32 0, %v413
        %v415 = vrot.slane %v410, %v414
        %v449 = vunpack.c.l.b16 %v374
        %v450 = vunpack.c.l.b16 %v375
        %v451 = vunpack.c.l.b16 %v376
        %v452 = vunpack.c.l.b16 %v377
        %v453 = vunpack.c.l.b16 %v378
        %v454 = vunpack.c.l.b16 %v379
        %v455 = vunpack.c.l.b16 %v380
        %v456 = vunpack.c.l.b16 %v381
        %v457 = vunpack.c.l.b16 %v382
        %v458 = vunpack.c.l.b16 %v383
        %v459 = vunpack.c.l.b16 %v384
        %v460 = vunpack.c.l.b16 %v385
        %v461 = vunpack.c.l.b16 %v386
        %v462 = vunpack.c.l.b16 %v387
        %v463 = vunpack.c.l.b16 %v388
        %v464 = vunpack.c.l.b16 %v389
        %v465 = vunpack.c.l.b16 %v390
        %v466 = vunpack.c.l.b16 %v391
        %v467 = vunpack.c.l.b16 %v392
        %v468 = vunpack.c.l.b16 %v393
        %v469 = vunpack.c.l.b16 %v394
        %v470 = vunpack.c.l.b16 %v395
        %v471 = vunpack.c.l.b16 %v396
        %v472 = vunpack.c.l.b16 %v397
        %v473 = vunpack.c.l.b16 %v398
        %v474 = vunpack.c.l.b16 %v399
        %v475 = vunpack.c.l.b16 %v400
        %v476 = vunpack.c.l.b16 %v401
        %v477 = vunpack.c.l.b16 %v402
        %v478 = vunpack.c.l.b16 %v403
        %v479 = vunpack.c.l.b16 %v404
        %v480 = vunpack.c.l.b16 %v405
        %v481 = vpack.c.b16 %v450, %v449
        %v482 = vpack.c.b16 %v452, %v451
        %v483 = vpack.c.b16 %v454, %v453
        %v484 = vpack.c.b16 %v456, %v455
        %v485 = vpack.c.b16 %v458, %v457
        %v486 = vpack.c.b16 %v460, %v459
        %v487 = vpack.c.b16 %v462, %v461
        %v488 = vpack.c.b16 %v464, %v463
        %v489 = vpack.c.b16 %v466, %v465
        %v490 = vpack.c.b16 %v468, %v467
        %v491 = vpack.c.b16 %v470, %v469
        %v492 = vpack.c.b16 %v472, %v471
        %v493 = vpack.c.b16 %v474, %v473
        %v494 = vpack.c.b16 %v476, %v475
        %v495 = vpack.c.b16 %v478, %v477
        %v496 = vpack.c.b16 %v480, %v479
        %v501 = vunpack.c.l.b16 %v406
        %v502 = vunpack.c.l.b16 %v407
        %v503 = vunpack.c.l.b16 %v408
        %v504 = vunpack.c.l.b16 %v409
        %v505 = vpack.c.b16 %v502, %v501
        %v506 = vpack.c.b16 %v504, %v503
        %vm509 = vcmask 261120
        %v511 = vsel %vm509, %v481, 0
        %v514 = vsel %vm509, %v482, 0
        %v517 = vsel %vm509, %v483, 0
        %v520 = vsel %vm509, %v484, 0
        %v523 = vsel %vm509, %v485, 0
        %v526 = vsel %vm509, %v486, 0
        %v529 = vsel %vm509, %v487, 0
        %v532 = vsel %vm509, %v488, 0
        %v535 = vsel %vm509, %v489, 0
        %v538 = vsel %vm509, %v490, 0
        %v541 = vsel %vm509, %v491, 0
        %v544 = vsel %vm509, %v492, 0
        %v547 = vsel %vm509, %v493, 0
        %v550 = vsel %vm509, %v494, 0
        %v553 = vsel %vm509, %v495, 0
        %v556 = vsel %vm509, %v496, 0
        %558 = vmatprep.subr.bf16.mxu0 0
        %559 = vmatpush1.bf16.msra.mxu0 %v505
        %560 = vmatprep.subr.bf16.mxu0 0
        %561 = vmatpush1.bf16.msra.mxu0 %v506
        %562 = vmatprep.subr.bf16.mxu0 0
        %563 = vmatpush1.bf16.msra.mxu0 0
        %564 = vmatprep.subr.bf16.mxu0 0
        %565 = vmatpush1.bf16.msra.mxu0 0
        %566 = vmatprep.subr.bf16.mxu0 0
        %567 = vmatpush1.bf16.msra.mxu0 0
        %568 = vmatprep.subr.bf16.mxu0 0
        %569 = vmatpush1.bf16.msra.mxu0 0
        %570 = vmatprep.subr.bf16.mxu0 0
        %571 = vmatpush1.bf16.msra.mxu0 0
        %572 = vmatprep.subr.bf16.mxu0 0
        %573 = vmatpush1.bf16.msra.mxu0 0
        %574 = vmatprep.subr.bf16.mxu0 0
        %575 = vmatpush1.bf16.msra.mxu0 0
        %576 = vmatprep.subr.bf16.mxu0 0
        %577 = vmatpush1.bf16.msra.mxu0 0
        %578 = vmatprep.subr.bf16.mxu0 0
        %579 = vmatpush1.bf16.msra.mxu0 0
        %580 = vmatprep.subr.bf16.mxu0 0
        %581 = vmatpush1.bf16.msra.mxu0 0
        %582 = vmatprep.subr.bf16.mxu0 0
        %583 = vmatpush1.bf16.msra.mxu0 0
        %584 = vmatprep.subr.bf16.mxu0 0
        %585 = vmatpush1.bf16.msra.mxu0 0
        %586 = vmatprep.subr.bf16.mxu0 0
        %587 = vmatpush1.bf16.msra.mxu0 0
        %588 = vmatprep.subr.bf16.mxu0 0
        %589 = vmatpush1.bf16.msra.mxu0 0
        %590 = vmatprep.mubr.bf16.mxu0 0
        %591 = vmatmul.mubr.bf16.gmra.mrb[0].mxu0 %v511
        %v592 = vpop.f32.mrb[0].mxu0
        %v593 = vadd.f32 %v415, %v592
        %v594 = vpop.f32.mrb[0].mxu0
        %v595 = vpop.f32.mrb[0].mxu0
        %v596 = vadd.f32 %v415, %v595
        %v597 = vpop.f32.mrb[0].mxu0
        %598 = vmatprep.mubr.bf16.mxu0 0
        %599 = vmatmul.mubr.bf16.gmra.mrb[0].mxu0 %v514
        %v600 = vpop.f32.mrb[0].mxu0
        %v601 = vadd.f32 %v415, %v600
        %v602 = vpop.f32.mrb[0].mxu0
        %v603 = vpop.f32.mrb[0].mxu0
        %v604 = vadd.f32 %v415, %v603
        %v605 = vpop.f32.mrb[0].mxu0
        %606 = vmatprep.mubr.bf16.mxu0 0
        %607 = vmatmul.mubr.bf16.gmra.mrb[0].mxu0 %v517
        %v608 = vpop.f32.mrb[0].mxu0
        %v609 = vadd.f32 %v415, %v608
        %v610 = vpop.f32.mrb[0].mxu0
        %v611 = vpop.f32.mrb[0].mxu0
        %v612 = vadd.f32 %v415, %v611
        %v613 = vpop.f32.mrb[0].mxu0
        %614 = vmatprep.mubr.bf16.mxu0 0
        %615 = vmatmul.mubr.bf16.gmra.mrb[0].mxu0 %v520
        %v616 = vpop.f32.mrb[0].mxu0
        %v617 = vadd.f32 %v415, %v616
        %v618 = vpop.f32.mrb[0].mxu0
        %v619 = vpop.f32.mrb[0].mxu0
        %v620 = vadd.f32 %v415, %v619
        %v621 = vpop.f32.mrb[0].mxu0
        %622 = vmatprep.mubr.bf16.mxu0 0
        %623 = vmatmul.mubr.bf16.gmra.mrb[0].mxu0 %v523
        %v624 = vpop.f32.mrb[0].mxu0
        %v625 = vadd.f32 %v415, %v624
        %v626 = vpop.f32.mrb[0].mxu0
        %v627 = vpop.f32.mrb[0].mxu0
        %v628 = vadd.f32 %v415, %v627
        %v629 = vpop.f32.mrb[0].mxu0
        %630 = vmatprep.mubr.bf16.mxu0 0
        %631 = vmatmul.mubr.bf16.gmra.mrb[0].mxu0 %v526
        %v632 = vpop.f32.mrb[0].mxu0
        %v633 = vadd.f32 %v415, %v632
        %v634 = vpop.f32.mrb[0].mxu0
        %v635 = vpop.f32.mrb[0].mxu0
        %v636 = vadd.f32 %v415, %v635
        %v637 = vpop.f32.mrb[0].mxu0
        %638 = vmatprep.mubr.bf16.mxu0 0
        %639 = vmatmul.mubr.bf16.gmra.mrb[0].mxu0 %v529
        %v640 = vpop.f32.mrb[0].mxu0
        %v641 = vadd.f32 %v415, %v640
        %v642 = vpop.f32.mrb[0].mxu0
        %v643 = vpop.f32.mrb[0].mxu0
        %v644 = vadd.f32 %v415, %v643
        %v645 = vpop.f32.mrb[0].mxu0
        %646 = vmatprep.mubr.bf16.mxu0 0
        %647 = vmatmul.mubr.bf16.gmra.mrb[0].mxu0 %v532
        %v648 = vpop.f32.mrb[0].mxu0
        %v649 = vadd.f32 %v415, %v648
        %v650 = vpop.f32.mrb[0].mxu0
        %v651 = vpop.f32.mrb[0].mxu0
        %v652 = vadd.f32 %v415, %v651
        %v653 = vpop.f32.mrb[0].mxu0
        %654 = vmatprep.mubr.bf16.mxu0 0
        %655 = vmatmul.mubr.bf16.gmra.mrb[0].mxu0 %v535
        %v656 = vpop.f32.mrb[0].mxu0
        %v657 = vadd.f32 %v415, %v656
        %v658 = vpop.f32.mrb[0].mxu0
        %v659 = vpop.f32.mrb[0].mxu0
        %v660 = vadd.f32 %v415, %v659
        %v661 = vpop.f32.mrb[0].mxu0
        %662 = vmatprep.mubr.bf16.mxu0 0
        %663 = vmatmul.mubr.bf16.gmra.mrb[0].mxu0 %v538
        %v664 = vpop.f32.mrb[0].mxu0
        %v665 = vadd.f32 %v415, %v664
        %v666 = vpop.f32.mrb[0].mxu0
        %v667 = vpop.f32.mrb[0].mxu0
        %v668 = vadd.f32 %v415, %v667
        %v669 = vpop.f32.mrb[0].mxu0
        %670 = vmatprep.mubr.bf16.mxu0 0
        %671 = vmatmul.mubr.bf16.gmra.mrb[0].mxu0 %v541
        %v672 = vpop.f32.mrb[0].mxu0
        %v673 = vadd.f32 %v415, %v672
        %v674 = vpop.f32.mrb[0].mxu0
        %v675 = vpop.f32.mrb[0].mxu0
        %v676 = vadd.f32 %v415, %v675
        %v677 = vpop.f32.mrb[0].mxu0
        %678 = vmatprep.mubr.bf16.mxu0 0
        %679 = vmatmul.mubr.bf16.gmra.mrb[0].mxu0 %v544
        %v680 = vpop.f32.mrb[0].mxu0
        %v681 = vadd.f32 %v415, %v680
        %v682 = vpop.f32.mrb[0].mxu0
        %v683 = vpop.f32.mrb[0].mxu0
        %v684 = vadd.f32 %v415, %v683
        %v685 = vpop.f32.mrb[0].mxu0
        %686 = vmatprep.mubr.bf16.mxu0 0
        %687 = vmatmul.mubr.bf16.gmra.mrb[0].mxu0 %v547
        %v688 = vpop.f32.mrb[0].mxu0
        %v689 = vadd.f32 %v415, %v688
        %v690 = vpop.f32.mrb[0].mxu0
        %v691 = vpop.f32.mrb[0].mxu0
        %v692 = vadd.f32 %v415, %v691
        %v693 = vpop.f32.mrb[0].mxu0
        %694 = vmatprep.mubr.bf16.mxu0 0
        %695 = vmatmul.mubr.bf16.gmra.mrb[0].mxu0 %v550
        %v696 = vpop.f32.mrb[0].mxu0
        %v697 = vadd.f32 %v415, %v696
        %v698 = vpop.f32.mrb[0].mxu0
        %v699 = vpop.f32.mrb[0].mxu0
        %v700 = vadd.f32 %v415, %v699
        %v701 = vpop.f32.mrb[0].mxu0
        %702 = vmatprep.mubr.bf16.mxu0 0
        %703 = vmatmul.mubr.bf16.gmra.mrb[0].mxu0 %v553
        %v704 = vpop.f32.mrb[0].mxu0
        %v705 = vadd.f32 %v415, %v704
        %v706 = vpop.f32.mrb[0].mxu0
        %v707 = vpop.f32.mrb[0].mxu0
        %v708 = vadd.f32 %v415, %v707
        %v709 = vpop.f32.mrb[0].mxu0
        %710 = vmatprep.mubr.bf16.mxu0 0
        %711 = vmatmul.mubr.bf16.gmra.mrb[0].mxu0 %v556
        %v712 = vpop.f32.mrb[0].mxu0
        %v713 = vadd.f32 %v415, %v712
        %v714 = vpop.f32.mrb[0].mxu0
        %v715 = vpop.f32.mrb[0].mxu0
        %v716 = vadd.f32 %v415, %v715
        %v717 = vpop.f32.mrb[0].mxu0
        %718 = vdwg.mxu0
        %v719 = vmax.f32 %v593, 0.0
        %v720 = vmax.f32 %v596, 0.0
        %v721 = vmax.f32 %v601, 0.0
        %v722 = vmax.f32 %v604, 0.0
        %v723 = vmax.f32 %v609, 0.0
        %v724 = vmax.f32 %v612, 0.0
        %v725 = vmax.f32 %v617, 0.0
        %v726 = vmax.f32 %v620, 0.0
        %v727 = vmax.f32 %v625, 0.0
        %v728 = vmax.f32 %v628, 0.0
        %v729 = vmax.f32 %v633, 0.0
        %v730 = vmax.f32 %v636, 0.0
        %v731 = vmax.f32 %v641, 0.0
        %v732 = vmax.f32 %v644, 0.0
        %v733 = vmax.f32 %v649, 0.0
        %v734 = vmax.f32 %v652, 0.0
        %v735 = vmax.f32 %v657, 0.0
        %v736 = vmax.f32 %v660, 0.0
        %v737 = vmax.f32 %v665, 0.0
        %v738 = vmax.f32 %v668, 0.0
        %v739 = vmax.f32 %v673, 0.0
        %v740 = vmax.f32 %v676, 0.0
        %v741 = vmax.f32 %v681, 0.0
        %v742 = vmax.f32 %v684, 0.0
        %v743 = vmax.f32 %v689, 0.0
        %v744 = vmax.f32 %v692, 0.0
        %v745 = vmax.f32 %v697, 0.0
        %v746 = vmax.f32 %v700, 0.0
        %v747 = vmax.f32 %v705, 0.0
        %v748 = vmax.f32 %v708, 0.0
        %v749 = vmax.f32 %v713, 0.0
        %v750 = vmax.f32 %v716, 0.0
        %vm751 = vcmask 523264
        %v752 = vsel %vm751, %v719, 0.0
        %v753 = vsel %vm751, %v720, 0.0
        %v754 = vadd.f32 %v752, %v753
        %v755 = vsel %vm751, %v721, 0.0
        %v756 = vadd.f32 %v754, %v755
        %v757 = vsel %vm751, %v722, 0.0
        %v758 = vadd.f32 %v756, %v757
        %v759 = vsel %vm751, %v723, 0.0
        %v760 = vadd.f32 %v758, %v759
        %v761 = vsel %vm751, %v724, 0.0
        %v762 = vadd.f32 %v760, %v761
        %v763 = vsel %vm751, %v725, 0.0
        %v764 = vadd.f32 %v762, %v763
        %v765 = vsel %vm751, %v726, 0.0
        %v766 = vadd.f32 %v764, %v765
        %v767 = vsel %vm751, %v727, 0.0
        %v768 = vadd.f32 %v766, %v767
        %v769 = vsel %vm751, %v728, 0.0
        %v770 = vadd.f32 %v768, %v769
        %v771 = vsel %vm751, %v729, 0.0
        %v772 = vadd.f32 %v770, %v771
        %v773 = vsel %vm751, %v730, 0.0
        %v774 = vadd.f32 %v772, %v773
        %v775 = vsel %vm751, %v731, 0.0
        %v776 = vadd.f32 %v774, %v775
        %v777 = vsel %vm751, %v732, 0.0
        %v778 = vadd.f32 %v776, %v777
        %v779 = vsel %vm751, %v733, 0.0
        %v780 = vadd.f32 %v778, %v779
        %v781 = vsel %vm751, %v734, 0.0
        %v782 = vadd.f32 %v780, %v781
        %v783 = vsel %vm751, %v735, 0.0
        %v784 = vadd.f32 %v782, %v783
        %v785 = vsel %vm751, %v736, 0.0
        %v786 = vadd.f32 %v784, %v785
        %v787 = vsel %vm751, %v737, 0.0
        %v788 = vadd.f32 %v786, %v787
        %v789 = vsel %vm751, %v738, 0.0
        %v790 = vadd.f32 %v788, %v789
        %v791 = vsel %vm751, %v739, 0.0
        %v792 = vadd.f32 %v790, %v791
        %v793 = vsel %vm751, %v740, 0.0
        %v794 = vadd.f32 %v792, %v793
        %v795 = vsel %vm751, %v741, 0.0
        %v796 = vadd.f32 %v794, %v795
        %v797 = vsel %vm751, %v742, 0.0
        %v798 = vadd.f32 %v796, %v797
        %v799 = vsel %vm751, %v743, 0.0
        %v800 = vadd.f32 %v798, %v799
        %v801 = vsel %vm751, %v744, 0.0
        %v802 = vadd.f32 %v800, %v801
        %v803 = vsel %vm751, %v745, 0.0
        %v804 = vadd.f32 %v802, %v803
        %v805 = vsel %vm751, %v746, 0.0
        %v806 = vadd.f32 %v804, %v805
        %v807 = vsel %vm751, %v747, 0.0
        %v808 = vadd.f32 %v806, %v807
        %v809 = vsel %vm751, %v748, 0.0
        %v810 = vadd.f32 %v808, %v809
        %v811 = vsel %vm751, %v749, 0.0
        %v812 = vadd.f32 %v810, %v811
        %v813 = vsel %vm751, %v750, 0.0
        %v814 = vadd.f32 %v812, %v813
        %v815 = vrot.slane %v814, 4
        %v816 = vadd.f32 %v814, %v815
        %v817 = vrot.slane %v816, 2
        %v818 = vadd.f32 %v816, %v817
        %v819 = vrot.slane %v818, 1
        %v820 = vadd.f32 %v818, %v819
        %v821 = vmul.f32 %v820, 0.00390625
        %v822 = vld [vmem:[%s372] sm:$0x1]
        %v823 = vpack.c.bf16 %v822, %v822
        %v824 = vld [vmem:[%s4] sm:$0xf]
        %v825 = vld [vmem:[%s5] sm:$0x1]
        %vm826 = vcmask 64512
        %v828 = vsel %vm826, %v823, 0
        %vm830 = vcmask 1043456
        %v832 = vsel %vm830, %v824, 0
        %834 = vmatprep.subr.bf16.mxu0 0
        %835 = vmatpush1.bf16.msra.mxu0 %v832
        %836 = vmatprep.subr.bf16.mxu0 0
        %837 = vmatpush1.bf16.msra.mxu0 0
        %838 = vmatprep.subr.bf16.mxu0 0
        %839 = vmatpush1.bf16.msra.mxu0 0
        %840 = vmatprep.subr.bf16.mxu0 0
        %841 = vmatpush1.bf16.msra.mxu0 0
        %842 = vmatprep.subr.bf16.mxu0 0
        %843 = vmatpush1.bf16.msra.mxu0 0
        %844 = vmatprep.subr.bf16.mxu0 0
        %845 = vmatpush1.bf16.msra.mxu0 0
        %846 = vmatprep.subr.bf16.mxu0 0
        %847 = vmatpush1.bf16.msra.mxu0 0
        %848 = vmatprep.subr.bf16.mxu0 0
        %849 = vmatpush1.bf16.msra.mxu0 0
        %850 = vmatprep.subr.bf16.mxu0 0
        %851 = vmatpush1.bf16.msra.mxu0 0
        %852 = vmatprep.subr.bf16.mxu0 0
        %853 = vmatpush1.bf16.msra.mxu0 0
        %854 = vmatprep.subr.bf16.mxu0 0
        %855 = vmatpush1.bf16.msra.mxu0 0
        %856 = vmatprep.subr.bf16.mxu0 0
        %857 = vmatpush1.bf16.msra.mxu0 0
        %858 = vmatprep.subr.bf16.mxu0 0
        %859 = vmatpush1.bf16.msra.mxu0 0
        %860 = vmatprep.subr.bf16.mxu0 0
        %861 = vmatpush1.bf16.msra.mxu0 0
        %862 = vmatprep.subr.bf16.mxu0 0
        %863 = vmatpush1.bf16.msra.mxu0 0
        %864 = vmatprep.subr.bf16.mxu0 0
        %865 = vmatpush1.bf16.msra.mxu0 0
        %866 = vmatprep.mubr.bf16.mxu0 0
        %867 = vmatmul.mubr.bf16.gmra.mrb[0].mxu0 %v828
        %v868 = vpop.f32.mrb[0].mxu0
        %v869 = vadd.f32 %v825, %v868
        %v870 = vpop.f32.mrb[0].mxu0
        %v871 = vpop.f32.mrb[0].mxu0
        %v872 = vpop.f32.mrb[0].mxu0
        %873 = vdwg.mxu0
        %v874 = vxor.u32 %v869, 2147483648
        %v875 = vmul.f32 %v874, 1.442695
        %v876 = vpow.pop %v875
        %v877 = vadd.f32 %v876, 1.0
        %v878 = vrcp.pop %v877
        %v879 = vmul.f32 1.0, %v878
        %v880 = vmul.f32 %v869, %v879
        %v881 = vpack.c.bf16 %v880, %v880
        %v882 = vld [vmem:[%s6] sm:$0xf]
        %v883 = vld [vmem:[%s6 + $0x4] sm:$0xf]
        %v884 = vld [vmem:[%s6 + $0x8] sm:$0xf]
        %v885 = vld [vmem:[%s6 + $0xc] sm:$0xf]
        %v886 = vld [vmem:[%s7] sm:$0x1]
        %v891 = vunpack.c.l.b16 %v882
        %v892 = vunpack.c.l.b16 %v883
        %v893 = vunpack.c.l.b16 %v884
        %v894 = vunpack.c.l.b16 %v885
        %v895 = vpack.c.b16 %v892, %v891
        %v896 = vpack.c.b16 %v894, %v893
        %v900 = vsel %vm509, %v881, 0
        %902 = vmatprep.subr.bf16.mxu0 0
        %903 = vmatpush1.bf16.msra.mxu0 %v895
        %904 = vmatprep.subr.bf16.mxu0 0
        %905 = vmatpush1.bf16.msra.mxu0 %v896
        %906 = vmatprep.subr.bf16.mxu0 0
        %907 = vmatpush1.bf16.msra.mxu0 0
        %908 = vmatprep.subr.bf16.mxu0 0
        %909 = vmatpush1.bf16.msra.mxu0 0
        %910 = vmatprep.subr.bf16.mxu0 0
        %911 = vmatpush1.bf16.msra.mxu0 0
        %912 = vmatprep.subr.bf16.mxu0 0
        %913 = vmatpush1.bf16.msra.mxu0 0
        %914 = vmatprep.subr.bf16.mxu0 0
        %915 = vmatpush1.bf16.msra.mxu0 0
        %916 = vmatprep.subr.bf16.mxu0 0
        %917 = vmatpush1.bf16.msra.mxu0 0
        %918 = vmatprep.subr.bf16.mxu0 0
        %919 = vmatpush1.bf16.msra.mxu0 0
        %920 = vmatprep.subr.bf16.mxu0 0
        %921 = vmatpush1.bf16.msra.mxu0 0
        %922 = vmatprep.subr.bf16.mxu0 0
        %923 = vmatpush1.bf16.msra.mxu0 0
        %924 = vmatprep.subr.bf16.mxu0 0
        %925 = vmatpush1.bf16.msra.mxu0 0
        %926 = vmatprep.subr.bf16.mxu0 0
        %927 = vmatpush1.bf16.msra.mxu0 0
        %928 = vmatprep.subr.bf16.mxu0 0
        %929 = vmatpush1.bf16.msra.mxu0 0
        %930 = vmatprep.subr.bf16.mxu0 0
        %931 = vmatpush1.bf16.msra.mxu0 0
        %932 = vmatprep.subr.bf16.mxu0 0
        %933 = vmatpush1.bf16.msra.mxu0 0
        %934 = vmatprep.mubr.bf16.mxu0 0
        %935 = vmatmul.mubr.bf16.gmra.mrb[0].mxu0 %v900
        %v936 = vpop.f32.mrb[0].mxu0
        %v937 = vadd.f32 %v886, %v936
        %v938 = vpop.f32.mrb[0].mxu0
        %v939 = vpop.f32.mrb[0].mxu0
        %v940 = vpop.f32.mrb[0].mxu0
        %941 = vdwg.mxu0
        %v942 = vxor.u32 %v937, 2147483648
        %v943 = vmul.f32 %v942, 1.442695
        %v944 = vpow.pop %v943
        %v945 = vadd.f32 %v944, 1.0
        %v946 = vrcp.pop %v945
        %v947 = vmul.f32 1.0, %v946
        %v948 = vmul.f32 %v937, %v947
        %950 = vrot.lane.b32.xlu0 %v948, 64
        %v951 = vpop.permute.xlu0 %950
        %v953 = vsel %vm751, %v821, %v951
        %v954 = vpack.c.bf16 %v953, %v953
        %v955 = vld [vmem:[%s8] sm:$0xf]
        %v956 = vld [vmem:[%s8 + $0x4] sm:$0xf]
        %v957 = vld [vmem:[%s8 + $0x8] sm:$0xf]
        %v958 = vld [vmem:[%s8 + $0xc] sm:$0xf]
        %v959 = vld [vmem:[%s8 + $0x10] sm:$0xf]
        %v960 = vld [vmem:[%s8 + $0x14] sm:$0xf]
        %v961 = vld [vmem:[%s8 + $0x18] sm:$0xf]
        %v962 = vld [vmem:[%s8 + $0x1c] sm:$0xf]
        %v963 = vld [vmem:[%s8 + $0x20] sm:$0xf]
        %v964 = vld [vmem:[%s8 + $0x24] sm:$0xf]
        %v965 = vld [vmem:[%s9] sm:$0x1]
        %v976 = vunpack.c.l.b16 %v955
        %v977 = vunpack.c.l.b16 %v956
        %v978 = vunpack.c.l.b16 %v957
        %v979 = vunpack.c.l.b16 %v958
        %v980 = vunpack.c.l.b16 %v959
        %v981 = vunpack.c.l.b16 %v960
        %v982 = vunpack.c.l.b16 %v961
        %v983 = vunpack.c.l.b16 %v962
        %v984 = vunpack.c.l.b16 %v963
        %v985 = vunpack.c.l.b16 %v964
        %v986 = vpack.c.b16 %v977, %v976
        %v987 = vpack.c.b16 %v979, %v978
        %v988 = vpack.c.b16 %v981, %v980
        %v989 = vpack.c.b16 %v983, %v982
        %v990 = vpack.c.b16 %v985, %v984
        %vm996 = vcmask 654336
        %v998 = vsel %vm996, %v954, 0
        %1000 = vmatprep.subr.bf16.mxu0 0
        %1001 = vmatpush1.bf16.msra.mxu0 %v986
        %1002 = vmatprep.subr.bf16.mxu0 0
        %1003 = vmatpush1.bf16.msra.mxu0 %v987
        %1004 = vmatprep.subr.bf16.mxu0 0
        %1005 = vmatpush1.bf16.msra.mxu0 %v988
        %1006 = vmatprep.subr.bf16.mxu0 0
        %1007 = vmatpush1.bf16.msra.mxu0 %v989
        %1008 = vmatprep.subr.bf16.mxu0 0
        %1009 = vmatpush1.bf16.msra.mxu0 %v990
        %1010 = vmatprep.subr.bf16.mxu0 0
        %1011 = vmatpush1.bf16.msra.mxu0 0
        %1012 = vmatprep.subr.bf16.mxu0 0
        %1013 = vmatpush1.bf16.msra.mxu0 0
        %1014 = vmatprep.subr.bf16.mxu0 0
        %1015 = vmatpush1.bf16.msra.mxu0 0
        %1016 = vmatprep.subr.bf16.mxu0 0
        %1017 = vmatpush1.bf16.msra.mxu0 0
        %1018 = vmatprep.subr.bf16.mxu0 0
        %1019 = vmatpush1.bf16.msra.mxu0 0
        %1020 = vmatprep.subr.bf16.mxu0 0
        %1021 = vmatpush1.bf16.msra.mxu0 0
        %1022 = vmatprep.subr.bf16.mxu0 0
        %1023 = vmatpush1.bf16.msra.mxu0 0
        %1024 = vmatprep.subr.bf16.mxu0 0
        %1025 = vmatpush1.bf16.msra.mxu0 0
        %1026 = vmatprep.subr.bf16.mxu0 0
        %1027 = vmatpush1.bf16.msra.mxu0 0
        %1028 = vmatprep.subr.bf16.mxu0 0
        %1029 = vmatpush1.bf16.msra.mxu0 0
        %1030 = vmatprep.subr.bf16.mxu0 0
        %1031 = vmatpush1.bf16.msra.mxu0 0
        %1032 = vmatprep.mubr.bf16.mxu0 0
        %1033 = vmatmul.mubr.bf16.gmra.mrb[0].mxu0 %v998
        %v1034 = vpop.f32.mrb[0].mxu0
        %v1035 = vadd.f32 %v965, %v1034
        %v1036 = vpop.f32.mrb[0].mxu0
        %v1037 = vpop.f32.mrb[0].mxu0
        %v1038 = vpop.f32.mrb[0].mxu0
        %1039 = vdwg.mxu0
        %1040 = vst [vmem:[%s363] sm:$0x1] %v1035
        %s1041 = sand.u32 %s252, 1
        %s1042 = scalar_lea.sflag [#allocation3], %s1041
        %s1043 = sand.u32 %s252, 1
        %s1044 = scalar_lea.vmem [#allocation2], %s1043
        // Predicated region
        $region61: #{_lambda_.1} parent=59 // pred_check
          %p1045 = pneg %p262
        $region62: #{_lambda_.1} parent=59 // pred_check_branch
          %1047 = sbr.rel (%p1045) target = $region64
        $region63: #{_lambda_.1} parent=59 // pred_region
          %s1049 = ssub.s32 16, 16
          %1050 = vsyncadd %s1042, %s1049
          %s1051 = smul.addr %s24, 16
          %s1052 = scalar_lea.hbm %s10, %s1051
          %s1054 = sshll.u32 %s1044, 4
          %s1055 = int_to_ptr.vmem [resolvable:$true] %s1054
          %1057 = dma.vmem_to_hbm [thread:$0]  %s1055, 16, %s1052, %s1042
        $region64: #{_lambda_.1} parent=59 // pred_fallthru
          _
      $region60: #{_lambda_.1} parent=5 // pred_fallthru
        _
      %p1058 = scmp.le.s32.totalorder 2, %s19
      // Predicated region
      $region65: #{_lambda_.1} parent=5 // pred_check
        %p1059 = pneg %p1058
      $region66: #{_lambda_.1} parent=5 // pred_check_branch
        %1061 = sbr.rel (%p1059) target = $region68
      $region67: #{_lambda_.1} parent=5 // pred_region
        %s1062 = ssub.s32 %s19, 2
        // Predicated region
        $region69: #{_lambda_.1} parent=67 // pred_check
          %p1063 = pneg %p268
        $region70: #{_lambda_.1} parent=67 // pred_check_branch
          %1065 = sbr.rel (%p1063) target = $region72
        $region71: #{_lambda_.1} parent=67 // pred_region
          %s1066 = sand.u32 %s253, 1
          %s1067 = scalar_lea.sflag [#allocation3], %s1066
          %s1068 = sand.u32 %s253, 1
          %s1069 = scalar_lea.vmem [#allocation2], %s1068
          %1070 = dma.done %s1067, 16
        $region72: #{_lambda_.1} parent=67 // pred_fallthru
          _
      $region68: #{_lambda_.1} parent=5 // pred_fallthru
        _
    $region6: #{_lambda_.1} parent=1 // loop_footer
      %s23 = sadd.s32 1, %s19
    $region7: #{_lambda_.1} parent=1 // loop_footer_branch
      %18 = sbr.rel target = $region3
    $region8: #{_lambda_.1} parent=1 // loop_exit
      _
    %1071 = vsyncpa [#allocation3], 1
    %s1072 = scalar_lea.sflag [#allocation3], 1
    %1073 = vsyncpa %s1072, 1

</llo_original>
